<compile_context>
chip_gen: v7x
topology: tpu7x:2x2x1
jax: 0.10.0
libtpu: 0.0.40
codegen_flags: <defaults>
</compile_context>

<pallas_src>
from functools import partial

import jax
import jax.numpy as jnp
from jax.experimental import pallas as pl
from jax.experimental.pallas import tpu as pltpu


def _vdropout_kernel(x_ref, m_ref, o_ref):
    # Elementwise hot path: apply the 0/1 keep-mask. The int8 -> x.dtype cast
    # happens on-chip (VPU slot, hidden under the HBM DMA), so the mask only
    # costs 1 byte/elem of HBM bandwidth.
    o_ref[...] = x_ref[...] * m_ref[...].astype(x_ref.dtype)


def _choose_layout(n):
    """Pick (lanes, tile_rows): lanes a multiple of 128, tile_rows a multiple
    of 32 (int8 native sublane tiling), targeting ~2 MiB of f32 per operand
    tile for large inputs and shrinking gracefully for small ones."""
    for lanes, tile_rows in ((2048, 256), (1024, 128), (512, 64), (128, 32)):
        if n >= lanes * tile_rows:
            return lanes, tile_rows
    return 128, 32


@partial(jax.jit, static_argnames=("lanes", "tile_rows"))
def _apply_mask(x, mask_i8, lanes, tile_rows):
    orig_shape = x.shape
    n = x.size
    tile_elems = lanes * tile_rows

    # Single pad on the flat view (skipped entirely when n is already a tile
    # multiple), then one free row-major reshape to the lane-dense slab.
    padded = ((n + tile_elems - 1) // tile_elems) * tile_elems
    pad = padded - n
    xf = x.reshape(-1)
    mf = mask_i8.reshape(-1)
    if pad:
        xf = jnp.pad(xf, (0, pad))
        mf = jnp.pad(mf, (0, pad))

    rows = padded // lanes
    x2d = xf.reshape(rows, lanes)
    m2d = mf.reshape(rows, lanes)
    grid = (rows // tile_rows,)

    out2d = pl.pallas_call(
        _vdropout_kernel,
        out_shape=jax.ShapeDtypeStruct((rows, lanes), x.dtype),
        grid_spec=pltpu.PrefetchScalarGridSpec(
            num_scalar_prefetch=0,
            grid=grid,
            in_specs=[
                pl.BlockSpec((tile_rows, lanes), lambda i: (i, 0)),
                pl.BlockSpec((tile_rows, lanes), lambda i: (i, 0)),
            ],
            out_specs=pl.BlockSpec((tile_rows, lanes), lambda i: (i, 0)),
        ),
        compiler_params=pltpu.CompilerParams(
            dimension_semantics=("parallel",),
        ),
    )(x2d, m2d)

    return out2d.reshape(-1)[:n].reshape(orig_shape)


class VDropout:
    """JAX/Pallas port of V_Dropout (stateful keep-mask dropout, no 1/p rescaling)."""

    def __init__(self, p):
        self._p = p
        self._mask_bool = None  # what get_mask() exposes (matches the torch bool mask)
        self._mask_i8 = None    # 1 B/elem copy streamed by the forward kernel

    def generate_mask(self, key, x):
        # torch.rand(*x.shape) <= p  ->  boolean keep-mask.
        # Mask generation is off the hot path, so plain jax.random keeps the
        # exact torch semantics; only the forward multiply runs as a kernel.
        self._mask_bool = jax.random.uniform(key, x.shape) <= self._p
        # Cast once at generation time (not per forward) so the kernel reads int8.
        self._mask_i8 = self._mask_bool.astype(jnp.int8)

    def get_mask(self):
        return self._mask_bool

    def __call__(self, x, training=True):
        if not training:
            return x
        if self._mask_i8 is None:
            raise ValueError("generate_mask() must be called before forward in training mode")
        if self._mask_i8.shape != x.shape:
            raise ValueError("mask shape does not match input shape")
        lanes, tile_rows = _choose_layout(x.size)
        return _apply_mask(x, self._mask_i8, lanes, tile_rows)


if __name__ == "__main__":
    key = jax.random.PRNGKey(0)
    kx, km = jax.random.split(key)

    # Small NCHW-style input consistent with how the module would be used.
    x = jax.random.normal(kx, (2, 4, 16, 16), dtype=jnp.float32)

    drop = VDropout(p=0.5)
    drop.generate_mask(km, x)

    y = jax.block_until_ready(drop(x, training=True))

    # Reference check (pure JAX elementwise, same promotion as torch bool*float).
    ref = x * drop.get_mask().astype(x.dtype)
    assert y.shape == x.shape and y.dtype == x.dtype
    assert jnp.allclose(y, ref), "mismatch vs reference"

    # Eval mode is identity.
    y_eval = jax.block_until_ready(drop(x, training=False))
    assert jnp.allclose(y_eval, x)

    print("KERNEL_OK")
</pallas_src>

<mosaic_0001>
module attributes {stable_mosaic.version = 11 : i64} {
  func.func @_vdropout_kernel(%arg0: i32, %arg1: memref<32x128xf32, #tpu.memory_space<vmem>>, %arg2: memref<32x128xi8, #tpu.memory_space<vmem>>, %arg3: memref<32x128xf32, #tpu.memory_space<vmem>>) attributes {dimension_semantics = [#tpu.dimension_semantics<parallel>], iteration_bounds = array<i64: 1>, scalar_prefetch = 0 : i64, scratch_operands = 0 : i64, tpu.core_type = #tpu.core_type<tc>, window_params = [{transform_indices = @transform_0, window_bounds = array<i64: 32, 128>}, {transform_indices = @transform_1, window_bounds = array<i64: 32, 128>}, {transform_indices = @transform_2, window_bounds = array<i64: 32, 128>}]} {
    %c0 = arith.constant 0 : index
    %c0_0 = arith.constant 0 : index
    %0 = vector.load %arg1[%c0, %c0_0] : memref<32x128xf32, #tpu.memory_space<vmem>>, vector<32x128xf32>
    %c0_1 = arith.constant 0 : index
    %c0_2 = arith.constant 0 : index
    %1 = vector.load %arg2[%c0_1, %c0_2] : memref<32x128xi8, #tpu.memory_space<vmem>>, vector<32x128xi8>
    %2 = arith.sitofp %1 : vector<32x128xi8> to vector<32x128xf32>
    %3 = arith.mulf %0, %2 : vector<32x128xf32>
    %c0_3 = arith.constant 0 : index
    %c0_4 = arith.constant 0 : index
    %4 = vector.load %arg3[%c0_3, %c0_4] : memref<32x128xf32, #tpu.memory_space<vmem>>, vector<32x128xf32>
    tpu.vector_store %arg3[%c0_3, %c0_4], %3 {strides = array<i32>} : memref<32x128xf32, #tpu.memory_space<vmem>>, vector<32x128xf32>,
    return
  }
  func.func @transform_0(%arg0: i32) -> (i32, i32) {
    %c0_i32 = arith.constant 0 : i32
    %c0_i32_0 = arith.constant 0 : i32
    return %arg0, %c0_i32 : i32, i32
  }
  func.func @transform_1(%arg0: i32) -> (i32, i32) {
    %c0_i32 = arith.constant 0 : i32
    %c0_i32_0 = arith.constant 0 : i32
    return %arg0, %c0_i32 : i32, i32
  }
  func.func @transform_2(%arg0: i32) -> (i32, i32) {
    %c0_i32 = arith.constant 0 : i32
    %c0_i32_0 = arith.constant 0 : i32
    return %arg0, %c0_i32 : i32, i32
  }
}

</mosaic_0001>

<llo_original>
// kernel: _apply_mask.1
$region0: #{_apply_mask.1}
  #allocation0 [shape = 'u32[]', space=smem, size = 0x4, offset = 0x4, fixed_abs, tag = 'smem constant byte address 0x4 - core index']
  #allocation1 [shape = 'u32[144,128]{1,0:T(1,128)}', space=vmem, size = 0x12000, scoped, tag = 'internal scratch']
  %s0 = inlined_call_operand.vmem [shape: f32[32,128], index: 0, kind: input, shape index: {}]
  %s1 = inlined_call_operand.vmem [shape: s8[32,128], index: 1, kind: input, shape index: {}]
  %s2 = inlined_call_operand.vmem [shape: f32[32,128], index: 2, kind: output, shape index: {}]
  %s3 = sld [smem:[#allocation0]]
  $region18: #{_apply_mask.1} parent=0
    _
  %s5 = ssub.s32 1, %s3
  %s6 = scalar_select 0, %s5, %s3
  // Predicated region
  $region2: #{_apply_mask.1} parent=0 // pred_check
    _
  $region3: #{_apply_mask.1} parent=0 // pred_check_branch
    %8 = sbr.rel (0) target = $region5
  $region4: #{_apply_mask.1} parent=0 // pred_region
    _
  $region5: #{_apply_mask.1} parent=0 // pred_fallthru
    _
  // Predicated region
  $region6: #{_apply_mask.1} parent=0 // pred_check
    _
  $region7: #{_apply_mask.1} parent=0 // pred_check_branch
    %10 = sbr.rel (0) target = $region9
  $region8: #{_apply_mask.1} parent=0 // pred_region
    _
  $region9: #{_apply_mask.1} parent=0 // pred_fallthru
    _
  %v11 = vld [vmem:[%s0] sm:$0xff]
  %v12 = vld [vmem:[%s0 + $0x8] sm:$0xff]
  %v13 = vld [vmem:[%s0 + $0x10] sm:$0xff]
  %v14 = vld [vmem:[%s0 + $0x18] sm:$0xff]
  %v15 = vld [vmem:[%s1] sm:$0xff]
  %v16 = vunpack.c.0.s8 %v15
  %v17 = vunpack.c.1.s8 %v15
  %v18 = vunpack.c.2.s8 %v15
  %v19 = vunpack.c.3.s8 %v15
  %v20 = vcvt.s32.f32 %v16
  %v21 = vcvt.s32.f32 %v17
  %v22 = vcvt.s32.f32 %v18
  %v23 = vcvt.s32.f32 %v19
  %v24 = vmul.f32 %v11, %v20
  %v25 = vmul.f32 %v12, %v21
  %v26 = vmul.f32 %v13, %v22
  %v27 = vmul.f32 %v14, %v23
  %28 = vst [vmem:[%s2] sm:$0xff] %v24
  %29 = vst [vmem:[%s2 + $0x8] sm:$0xff] %v25
  %30 = vst [vmem:[%s2 + $0x10] sm:$0xff] %v26
  %31 = vst [vmem:[%s2 + $0x18] sm:$0xff] %v27
  // Predicated region
  $region10: #{_apply_mask.1} parent=0 // pred_check
    _
  $region11: #{_apply_mask.1} parent=0 // pred_check_branch
    %33 = sbr.rel (0) target = $region13
  $region12: #{_apply_mask.1} parent=0 // pred_region
    _
  $region13: #{_apply_mask.1} parent=0 // pred_fallthru
    _
  // Predicated region
  $region14: #{_apply_mask.1} parent=0 // pred_check
    _
  $region15: #{_apply_mask.1} parent=0 // pred_check_branch
    %35 = sbr.rel (0) target = $region17
  $region16: #{_apply_mask.1} parent=0 // pred_region
    _
  $region17: #{_apply_mask.1} parent=0 // pred_fallthru
    _

</llo_original>
